<compile_context>
chip_gen: v7x
topology: tpu7x:2x2x1
jax: 0.10.0
libtpu: 0.0.40
codegen_flags: <defaults>
</compile_context>

<pallas_src>
import functools

import jax
import jax.numpy as jnp
from jax.experimental import pallas as pl
from jax.experimental.pallas import tpu as pltpu

LANE = 128     # lane width: last-dim padding granularity
SUBLANE = 8    # f32 sublane granularity: second-to-last dim padding


def _round_up(x, m):
    return ((x + m - 1) // m) * m


def _coupling_kernel(x_in_ref, x_add_ref,
                     w_in_ref, b_in_ref,
                     w_hid_ref, b_hid_ref,
                     w_out_ref, b_out_ref,
                     y_ref, *, n_layers, compute_dtype):
    # Input layer: Linear(n_inputs -> n_hiddens), no activation (matches the
    # PyTorch ReLU_MLP, which only puts ReLU after the hidden Linears).
    x = x_in_ref[...]
    h = jnp.dot(x.astype(compute_dtype), w_in_ref[...],
                preferred_element_type=jnp.float32) + b_in_ref[...]
    # Hidden layers: n_layers x (Linear(n_hiddens -> n_hiddens) + ReLU).
    # Statically unrolled; n_layers is small.
    for l in range(n_layers):
        h = jnp.dot(h.astype(compute_dtype), w_hid_ref[l],
                    preferred_element_type=jnp.float32) + b_hid_ref[l]
        h = jnp.maximum(h, 0.0)
    # Output layer: Linear(n_hiddens -> n_inputs), no activation.
    m = jnp.dot(h.astype(compute_dtype), w_out_ref[...],
                preferred_element_type=jnp.float32) + b_out_ref[...]
    # Additive coupling: y = x_add + m(x_in)   (f32, lane-dense store).
    y_ref[...] = x_add_ref[...] + m


@functools.partial(jax.jit, static_argnums=(3,))
def coupling_apply(x_in, x_add, params, n_layers):
    """y = x_add + ReLU_MLP(x_in), one Pallas kernel with a batch grid."""
    w_in, b_in, w_hid, b_hid, w_out, b_out = params   # already lane-padded
    B, n_inputs = x_in.shape
    ni_pad, h_pad = w_in.shape[0], w_in.shape[1]

    # Batch tile: tall enough to fill the MXU / hit HBM roofline at real batch
    # sizes; collapses to the sublane-padded batch for tiny demos.
    TB = min(512, _round_up(B, SUBLANE))
    B_pad = _round_up(B, TB)

    x_in_p = jnp.pad(x_in, ((0, B_pad - B), (0, ni_pad - n_inputs)))
    x_add_p = jnp.pad(x_add, ((0, B_pad - B), (0, ni_pad - n_inputs)))

    # Explicit VMEM budget: resident weights + double-buffered activation
    # tiles + live hidden activation, with ~50% headroom (clamped so it is
    # safe on v7x's 64 MiB physical VMEM).
    w_bytes = ((w_in.size + w_hid.size + w_out.size) * w_in.dtype.itemsize
               + (b_in.size + b_hid.size + b_out.size) * 4)
    act_bytes = 2 * TB * ni_pad * 4 * 3 + 2 * TB * h_pad * 4
    vmem_limit = int(min(max(int((w_bytes + act_bytes) * 1.5), 32 << 20),
                         96 << 20))

    flops = 2 * B_pad * (ni_pad * h_pad + n_layers * h_pad * h_pad
                         + h_pad * ni_pad)
    bytes_accessed = int((x_in_p.size + x_add_p.size + B_pad * ni_pad) * 4
                         + w_bytes)

    kernel = functools.partial(_coupling_kernel, n_layers=n_layers,
                               compute_dtype=w_in.dtype)

    def resident(shape):  # weights/biases: same block every grid step
        return pl.BlockSpec(shape, lambda i, _s=shape: (0,) * len(_s))

    y_p = pl.pallas_call(
        kernel,
        out_shape=jax.ShapeDtypeStruct((B_pad, ni_pad), jnp.float32),
        grid=(B_pad // TB,),
        in_specs=[
            pl.BlockSpec((TB, ni_pad), lambda i: (i, 0)),   # x_in tile
            pl.BlockSpec((TB, ni_pad), lambda i: (i, 0)),   # x_add tile
            resident((ni_pad, h_pad)),                      # w_in  (in, out)
            resident((1, h_pad)),                           # b_in
            resident((n_layers, h_pad, h_pad)),             # w_hid (in, out)
            resident((n_layers, 1, h_pad)),                 # b_hid
            resident((h_pad, ni_pad)),                      # w_out (in, out)
            resident((1, ni_pad)),                          # b_out
        ],
        out_specs=pl.BlockSpec((TB, ni_pad), lambda i: (i, 0)),
        input_output_aliases={1: 0},                        # write into x_add
        compiler_params=pltpu.CompilerParams(
            dimension_semantics=("parallel",),
            vmem_limit_bytes=vmem_limit),
        cost_estimate=pl.CostEstimate(
            flops=flops, transcendentals=0, bytes_accessed=bytes_accessed),
    )(x_in_p, x_add_p, w_in, b_in, w_hid, b_hid, w_out, b_out)

    return y_p[:B, :n_inputs]


class AdditiveCouplingLayer:
    """JAX/Pallas port of the PyTorch AdditiveCouplingLayer forward pass."""

    def __init__(self, n_inputs, n_layers, n_hiddens, type_, key,
                 weight_dtype=jnp.bfloat16):
        self.n_inputs = n_inputs
        self.n_layers = n_layers
        self.n_hiddens = n_hiddens
        self.type_ = type_
        self.weight_dtype = weight_dtype
        self.ni_pad = _round_up(n_inputs, LANE)
        self.h_pad = _round_up(n_hiddens, LANE)

        keys = jax.random.split(key, 6)

        def uni(k, shape, fan_in):
            bound = 1.0 / float(fan_in) ** 0.5   # nn.Linear default init
            return jax.random.uniform(k, shape, jnp.float32, -bound, bound)

        # Logical params, weights pre-transposed to (in, out).
        w_in = uni(keys[0], (n_inputs, n_hiddens), n_inputs)
        b_in = uni(keys[1], (1, n_hiddens), n_inputs)
        w_hid = uni(keys[2], (n_layers, n_hiddens, n_hiddens), n_hiddens)
        b_hid = uni(keys[3], (n_layers, 1, n_hiddens), n_hiddens)
        w_out = uni(keys[4], (n_hiddens, n_inputs), n_hiddens)
        b_out = uni(keys[5], (1, n_inputs), n_hiddens)

        # Zero-pad feature dims to multiples of 128 (lane-dense); bf16 weights.
        dn, dh = self.ni_pad - n_inputs, self.h_pad - n_hiddens
        self.w_in = jnp.pad(w_in, ((0, dn), (0, dh))).astype(weight_dtype)
        self.b_in = jnp.pad(b_in, ((0, 0), (0, dh)))
        self.w_hid = jnp.pad(w_hid, ((0, 0), (0, dh), (0, dh))).astype(weight_dtype)
        self.b_hid = jnp.pad(b_hid, ((0, 0), (0, 0), (0, dh)))
        self.w_out = jnp.pad(w_out, ((0, dh), (0, dn))).astype(weight_dtype)
        self.b_out = jnp.pad(b_out, ((0, 0), (0, dn)))

    @property
    def params(self):
        return (self.w_in, self.b_in, self.w_hid, self.b_hid,
                self.w_out, self.b_out)

    def forward(self, xs):
        x0, x1 = xs
        if self.type_ == 'odd':
            y0 = x0
            y1 = coupling_apply(x0, x1, self.params, self.n_layers)
        else:
            y1 = x1
            y0 = coupling_apply(x1, x0, self.params, self.n_layers)
        return (y0, y1)
    # TODO(synk): inverse() not ported; task covers the forward pass only.

    def mlp_ref(self, x):
        """Pure-JAX reference mirroring the kernel's math (bf16 matmuls)."""
        cd = self.weight_dtype
        xp = jnp.pad(x, ((0, 0), (0, self.ni_pad - self.n_inputs)))
        h = jnp.dot(xp.astype(cd), self.w_in,
                    preferred_element_type=jnp.float32) + self.b_in
        for l in range(self.n_layers):
            h = jnp.dot(h.astype(cd), self.w_hid[l],
                        preferred_element_type=jnp.float32) + self.b_hid[l]
            h = jnp.maximum(h, 0.0)
        m = jnp.dot(h.astype(cd), self.w_out,
                    preferred_element_type=jnp.float32) + self.b_out
        return m[:, :self.n_inputs]


if __name__ == "__main__":
    batch, n_inputs, n_layers, n_hiddens = 8, 16, 2, 32

    key = jax.random.PRNGKey(0)
    k_layer, k_x0, k_x1 = jax.random.split(key, 3)

    layer_odd = AdditiveCouplingLayer(n_inputs, n_layers, n_hiddens,
                                      type_='odd', key=k_layer)
    layer_even = AdditiveCouplingLayer(n_inputs, n_layers, n_hiddens,
                                       type_='even', key=k_layer)

    x0 = jax.random.normal(k_x0, (batch, n_inputs), jnp.float32)
    x1 = jax.random.normal(k_x1, (batch, n_inputs), jnp.float32)

    # odd: y0 = x0, y1 = x1 + m(x0)
    y0, y1 = layer_odd.forward((x0, x1))
    jax.block_until_ready((y0, y1))

    # even: y1 = x1, y0 = x0 + m(x1)
    z0, z1 = layer_even.forward((x0, x1))
    jax.block_until_ready((z0, z1))

    # correctness check against pure-JAX reference (same bf16/f32 math)
    ref_y1 = x1 + layer_odd.mlp_ref(x0)
    ref_z0 = x0 + layer_even.mlp_ref(x1)
    assert jnp.allclose(y0, x0)
    assert jnp.allclose(z1, x1)
    assert jnp.allclose(y1, ref_y1, atol=1e-3, rtol=1e-3)
    assert jnp.allclose(z0, ref_z0, atol=1e-3, rtol=1e-3)

    print("KERNEL_OK")
</pallas_src>

<mosaic_0001>
module attributes {stable_mosaic.version = 11 : i64} {
  func.func @_coupling_kernel(%arg0: i32, %arg1: memref<8x128xf32, #tpu.memory_space<vmem>>, %arg2: memref<8x128xf32, #tpu.memory_space<vmem>>, %arg3: memref<128x128xbf16, #tpu.memory_space<vmem>>, %arg4: memref<1x128xf32, #tpu.memory_space<vmem>>, %arg5: memref<2x128x128xbf16, #tpu.memory_space<vmem>>, %arg6: memref<2x1x128xf32, #tpu.memory_space<vmem>>, %arg7: memref<128x128xbf16, #tpu.memory_space<vmem>>, %arg8: memref<1x128xf32, #tpu.memory_space<vmem>>, %arg9: memref<8x128xf32, #tpu.memory_space<vmem>>) attributes {dimension_semantics = [#tpu.dimension_semantics<parallel>], iteration_bounds = array<i64: 1>, scalar_prefetch = 0 : i64, scratch_operands = 0 : i64, tpu.core_type = #tpu.core_type<tc>, window_params = [{transform_indices = @transform_0, window_bounds = array<i64: 8, 128>}, {transform_indices = @transform_1, window_bounds = array<i64: 8, 128>}, {pipeline_mode = #tpu.pipeline_mode<synchronous>, transform_indices = @transform_2, window_bounds = array<i64: 128, 128>}, {pipeline_mode = #tpu.pipeline_mode<synchronous>, transform_indices = @transform_3, window_bounds = array<i64: 1, 128>}, {pipeline_mode = #tpu.pipeline_mode<synchronous>, transform_indices = @transform_4, window_bounds = array<i64: 2, 128, 128>}, {pipeline_mode = #tpu.pipeline_mode<synchronous>, transform_indices = @transform_5, window_bounds = array<i64: 2, 1, 128>}, {pipeline_mode = #tpu.pipeline_mode<synchronous>, transform_indices = @transform_6, window_bounds = array<i64: 128, 128>}, {pipeline_mode = #tpu.pipeline_mode<synchronous>, transform_indices = @transform_7, window_bounds = array<i64: 1, 128>}, {transform_indices = @transform_8, window_bounds = array<i64: 8, 128>}]} {
    %c0 = arith.constant 0 : index
    %c0_0 = arith.constant 0 : index
    %0 = vector.load %arg1[%c0, %c0_0] : memref<8x128xf32, #tpu.memory_space<vmem>>, vector<8x128xf32>
    %1 = arith.truncf %0 : vector<8x128xf32> to vector<8x128xbf16>
    %c0_1 = arith.constant 0 : index
    %c0_2 = arith.constant 0 : index
    %2 = vector.load %arg3[%c0_1, %c0_2] : memref<128x128xbf16, #tpu.memory_space<vmem>>, vector<128x128xbf16>
    %cst = arith.constant dense<0.000000e+00> : vector<8x128xf32>
    %3 = tpu.matmul %1, %2, %cst {dimension_numbers = #tpu.dot_dimension_numbers<[1], [0], [0], [1], [0, 0, 1, 1], [], []>} : vector<8x128xbf16>, vector<128x128xbf16>, vector<8x128xf32> -> vector<8x128xf32>
    %c0_3 = arith.constant 0 : index
    %c0_4 = arith.constant 0 : index
    %4 = vector.load %arg4[%c0_3, %c0_4] : memref<1x128xf32, #tpu.memory_space<vmem>>, vector<1x128xf32>
    %5 = vector.broadcast %4 : vector<1x128xf32> to vector<8x128xf32>
    %6 = arith.addf %3, %5 : vector<8x128xf32>
    %7 = arith.truncf %6 : vector<8x128xf32> to vector<8x128xbf16>
    %c0_5 = arith.constant 0 : index
    %c0_6 = arith.constant 0 : index
    %c0_7 = arith.constant 0 : index
    %8 = vector.load %arg5[%c0_5, %c0_6, %c0_7] : memref<2x128x128xbf16, #tpu.memory_space<vmem>>, vector<1x128x128xbf16>
    %9 = vector.shape_cast %8 : vector<1x128x128xbf16> to vector<128x128xbf16>
    %cst_8 = arith.constant dense<0.000000e+00> : vector<8x128xf32>
    %10 = tpu.matmul %7, %9, %cst_8 {dimension_numbers = #tpu.dot_dimension_numbers<[1], [0], [0], [1], [0, 0, 1, 1], [], []>} : vector<8x128xbf16>, vector<128x128xbf16>, vector<8x128xf32> -> vector<8x128xf32>
    %c0_9 = arith.constant 0 : index
    %c0_10 = arith.constant 0 : index
    %c0_11 = arith.constant 0 : index
    %11 = vector.load %arg6[%c0_9, %c0_10, %c0_11] : memref<2x1x128xf32, #tpu.memory_space<vmem>>, vector<1x1x128xf32>
    %12 = vector.shape_cast %11 : vector<1x1x128xf32> to vector<1x128xf32>
    %13 = vector.broadcast %12 : vector<1x128xf32> to vector<8x128xf32>
    %14 = arith.addf %10, %13 : vector<8x128xf32>
    %cst_12 = arith.constant 0.000000e+00 : f32
    %15 = vector.broadcast %cst_12 : f32 to vector<8x128xf32>
    %16 = arith.maximumf %14, %15 : vector<8x128xf32>
    %17 = arith.truncf %16 : vector<8x128xf32> to vector<8x128xbf16>
    %c1 = arith.constant 1 : index
    %c0_13 = arith.constant 0 : index
    %c0_14 = arith.constant 0 : index
    %18 = vector.load %arg5[%c1, %c0_13, %c0_14] : memref<2x128x128xbf16, #tpu.memory_space<vmem>>, vector<1x128x128xbf16>
    %19 = vector.shape_cast %18 : vector<1x128x128xbf16> to vector<128x128xbf16>
    %cst_15 = arith.constant dense<0.000000e+00> : vector<8x128xf32>
    %20 = tpu.matmul %17, %19, %cst_15 {dimension_numbers = #tpu.dot_dimension_numbers<[1], [0], [0], [1], [0, 0, 1, 1], [], []>} : vector<8x128xbf16>, vector<128x128xbf16>, vector<8x128xf32> -> vector<8x128xf32>
    %c1_16 = arith.constant 1 : index
    %c0_17 = arith.constant 0 : index
    %c0_18 = arith.constant 0 : index
    %21 = vector.load %arg6[%c1_16, %c0_17, %c0_18] : memref<2x1x128xf32, #tpu.memory_space<vmem>>, vector<1x1x128xf32>
    %22 = vector.shape_cast %21 : vector<1x1x128xf32> to vector<1x128xf32>
    %23 = vector.broadcast %22 : vector<1x128xf32> to vector<8x128xf32>
    %24 = arith.addf %20, %23 : vector<8x128xf32>
    %cst_19 = arith.constant 0.000000e+00 : f32
    %25 = vector.broadcast %cst_19 : f32 to vector<8x128xf32>
    %26 = arith.maximumf %24, %25 : vector<8x128xf32>
    %27 = arith.truncf %26 : vector<8x128xf32> to vector<8x128xbf16>
    %c0_20 = arith.constant 0 : index
    %c0_21 = arith.constant 0 : index
    %28 = vector.load %arg7[%c0_20, %c0_21] : memref<128x128xbf16, #tpu.memory_space<vmem>>, vector<128x128xbf16>
    %cst_22 = arith.constant dense<0.000000e+00> : vector<8x128xf32>
    %29 = tpu.matmul %27, %28, %cst_22 {dimension_numbers = #tpu.dot_dimension_numbers<[1], [0], [0], [1], [0, 0, 1, 1], [], []>} : vector<8x128xbf16>, vector<128x128xbf16>, vector<8x128xf32> -> vector<8x128xf32>
    %c0_23 = arith.constant 0 : index
    %c0_24 = arith.constant 0 : index
    %30 = vector.load %arg8[%c0_23, %c0_24] : memref<1x128xf32, #tpu.memory_space<vmem>>, vector<1x128xf32>
    %31 = vector.broadcast %30 : vector<1x128xf32> to vector<8x128xf32>
    %32 = arith.addf %29, %31 : vector<8x128xf32>
    %c0_25 = arith.constant 0 : index
    %c0_26 = arith.constant 0 : index
    %33 = vector.load %arg2[%c0_25, %c0_26] : memref<8x128xf32, #tpu.memory_space<vmem>>, vector<8x128xf32>
    %34 = arith.addf %33, %32 : vector<8x128xf32>
    %c0_27 = arith.constant 0 : index
    %c0_28 = arith.constant 0 : index
    %35 = vector.load %arg9[%c0_27, %c0_28] : memref<8x128xf32, #tpu.memory_space<vmem>>, vector<8x128xf32>
    tpu.vector_store %arg9[%c0_27, %c0_28], %34 {strides = array<i32>} : memref<8x128xf32, #tpu.memory_space<vmem>>, vector<8x128xf32>,
    return
  }
  func.func @transform_0(%arg0: i32) -> (i32, i32) {
    %c0_i32 = arith.constant 0 : i32
    %c0_i32_0 = arith.constant 0 : i32
    return %arg0, %c0_i32 : i32, i32
  }
  func.func @transform_1(%arg0: i32) -> (i32, i32) {
    %c0_i32 = arith.constant 0 : i32
    %c0_i32_0 = arith.constant 0 : i32
    return %arg0, %c0_i32 : i32, i32
  }
  func.func @transform_2(%arg0: i32) -> (i32, i32) {
    %c0_i32 = arith.constant 0 : i32
    %c0_i32_0 = arith.constant 0 : i32
    %c0_i32_1 = arith.constant 0 : i32
    return %c0_i32, %c0_i32_0 : i32, i32
  }
  func.func @transform_3(%arg0: i32) -> (i32, i32) {
    %c0_i32 = arith.constant 0 : i32
    %c0_i32_0 = arith.constant 0 : i32
    %c0_i32_1 = arith.constant 0 : i32
    return %c0_i32, %c0_i32_0 : i32, i32
  }
  func.func @transform_4(%arg0: i32) -> (i32, i32, i32) {
    %c0_i32 = arith.constant 0 : i32
    %c0_i32_0 = arith.constant 0 : i32
    %c0_i32_1 = arith.constant 0 : i32
    %c0_i32_2 = arith.constant 0 : i32
    return %c0_i32, %c0_i32_0, %c0_i32_1 : i32, i32, i32
  }
  func.func @transform_5(%arg0: i32) -> (i32, i32, i32) {
    %c0_i32 = arith.constant 0 : i32
    %c0_i32_0 = arith.constant 0 : i32
    %c0_i32_1 = arith.constant 0 : i32
    %c0_i32_2 = arith.constant 0 : i32
    return %c0_i32, %c0_i32_0, %c0_i32_1 : i32, i32, i32
  }
  func.func @transform_6(%arg0: i32) -> (i32, i32) {
    %c0_i32 = arith.constant 0 : i32
    %c0_i32_0 = arith.constant 0 : i32
    %c0_i32_1 = arith.constant 0 : i32
    return %c0_i32, %c0_i32_0 : i32, i32
  }
  func.func @transform_7(%arg0: i32) -> (i32, i32) {
    %c0_i32 = arith.constant 0 : i32
    %c0_i32_0 = arith.constant 0 : i32
    %c0_i32_1 = arith.constant 0 : i32
    return %c0_i32, %c0_i32_0 : i32, i32
  }
  func.func @transform_8(%arg0: i32) -> (i32, i32) {
    %c0_i32 = arith.constant 0 : i32
    %c0_i32_0 = arith.constant 0 : i32
    return %arg0, %c0_i32 : i32, i32
  }
}

</mosaic_0001>

<llo_original>
// kernel: coupling_apply.1
$region0: #{coupling_apply.1}
  #allocation0 [shape = 'u32[]', space=smem, size = 0x4, offset = 0x4, fixed_abs, tag = 'smem constant byte address 0x4 - core index']
  #allocation1 [shape = 'u32[144,128]{1,0:T(1,128)}', space=vmem, size = 0x12000, scoped, tag = 'internal scratch']
  %s0 = inlined_call_operand.vmem [shape: f32[8,128], index: 0, kind: input, shape index: {}]
  %s1 = inlined_call_operand.vmem [shape: f32[8,128], index: 1, kind: input, shape index: {}, may-alias: {1,8}]
  %s2 = inlined_call_operand.hbm [shape: bf16[128,128], index: 2, kind: input, shape index: {}]
  %s3 = inlined_call_operand.vmem [shape: f32[1,128], index: 3, kind: input, shape index: {}]
  %s4 = inlined_call_operand.hbm [shape: bf16[2,128,128], index: 4, kind: input, shape index: {}]
  %s5 = inlined_call_operand.vmem [shape: f32[2,1,128], index: 5, kind: input, shape index: {}]
  %s6 = inlined_call_operand.hbm [shape: bf16[128,128], index: 6, kind: input, shape index: {}]
  %s7 = inlined_call_operand.vmem [shape: f32[1,128], index: 7, kind: input, shape index: {}]
  %s8 = inlined_call_operand.vmem [shape: f32[8,128], index: 8, kind: output, shape index: {}, may-alias: {1,8}]
  %s9 = sld [smem:[#allocation0]]
  $region54: #{coupling_apply.1} parent=0
    _
  %s11 = ssub.s32 1, %s9
  %s12 = scalar_select 0, %s11, %s9
  $region1: #{coupling_apply.1} parent=0
    #allocation2 [shape = 'u8[32768]{0}', space=vmem, size = 0x8000, scoped, tag = 'input window, operand 2, single buffered']
    #allocation3 [shape = 's32[1]{0}', space=sflag, size = 0x4, scoped, tag = 'scoped memory for coupling_apply.1']
    #allocation4 [shape = 'u8[65536]{0}', space=vmem, size = 0x10000, scoped, tag = 'input window, operand 4, single buffered']
    #allocation5 [shape = 's32[1]{0}', space=sflag, size = 0x4, scoped, tag = 'scoped memory for coupling_apply.1']
    #allocation6 [shape = 'u8[32768]{0}', space=vmem, size = 0x8000, scoped, tag = 'input window, operand 6, single buffered']
    %13 = vsyncpa [#allocation3], 0
    %14 = vsyncpa [#allocation5], 0
    // Predicated region
    $region2: #{coupling_apply.1} parent=1 // pred_check
      _
    $region3: #{coupling_apply.1} parent=1 // pred_check_branch
      %16 = sbr.rel (0) target = $region5
    $region4: #{coupling_apply.1} parent=1 // pred_region
      _
    $region5: #{coupling_apply.1} parent=1 // pred_fallthru
      _
    // Predicated region
    $region6: #{coupling_apply.1} parent=1 // pred_check
      _
    $region7: #{coupling_apply.1} parent=1 // pred_check_branch
      %18 = sbr.rel (0) target = $region9
    $region8: #{coupling_apply.1} parent=1 // pred_region
      _
    $region9: #{coupling_apply.1} parent=1 // pred_fallthru
      _
    // Predicated region
    $region10: #{coupling_apply.1} parent=1 // pred_check
      _
    $region11: #{coupling_apply.1} parent=1 // pred_check_branch
      %20 = sbr.rel (0) target = $region13
    $region12: #{coupling_apply.1} parent=1 // pred_region
      %s22 = ssub.s32 1024, 1024
      %23 = vsyncadd [#allocation3], %s22
      %s24 = sshll.u32 [#allocation2], 4
      %s25 = int_to_ptr.vmem [resolvable:$true] %s24
      %30 = dma.hbm_to_vmem [thread:$0]  %s2, 1024, %s25, [#allocation3], 64, 64, 4
    $region13: #{coupling_apply.1} parent=1 // pred_fallthru
      _
    // Predicated region
    $region14: #{coupling_apply.1} parent=1 // pred_check
      _
    $region15: #{coupling_apply.1} parent=1 // pred_check_branch
      %32 = sbr.rel (0) target = $region17
    $region16: #{coupling_apply.1} parent=1 // pred_region
      _
    $region17: #{coupling_apply.1} parent=1 // pred_fallthru
      _
    // Predicated region
    $region18: #{coupling_apply.1} parent=1 // pred_check
      _
    $region19: #{coupling_apply.1} parent=1 // pred_check_branch
      %34 = sbr.rel (0) target = $region21
    $region20: #{coupling_apply.1} parent=1 // pred_region
      %s36 = ssub.s32 2048, 2048
      %37 = vsyncadd [#allocation5], %s36
      %s38 = sshll.u32 [#allocation4], 4
      %s39 = int_to_ptr.vmem [resolvable:$true] %s38
      %44 = dma.hbm_to_vmem [thread:$0]  %s4, 2048, %s39, [#allocation5], 64, 64, 4
    $region21: #{coupling_apply.1} parent=1 // pred_fallthru
      _
    // Predicated region
    $region22: #{coupling_apply.1} parent=1 // pred_check
      _
    $region23: #{coupling_apply.1} parent=1 // pred_check_branch
      %46 = sbr.rel (0) target = $region25
    $region24: #{coupling_apply.1} parent=1 // pred_region
      _
    $region25: #{coupling_apply.1} parent=1 // pred_fallthru
      _
    // Predicated region
    $region26: #{coupling_apply.1} parent=1 // pred_check
      _
    $region27: #{coupling_apply.1} parent=1 // pred_check_branch
      %48 = sbr.rel (0) target = $region29
    $region28: #{coupling_apply.1} parent=1 // pred_region
      %s50 = ssub.s32 1024, 1024
      %51 = vsyncadd [#allocation5], %s50
      %s52 = sshll.u32 [#allocation6], 4
      %s53 = int_to_ptr.vmem [resolvable:$true] %s52
      %58 = dma.hbm_to_vmem [thread:$0]  %s6, 1024, %s53, [#allocation5], 64, 64, 4
    $region29: #{coupling_apply.1} parent=1 // pred_fallthru
      _
    // Predicated region
    $region30: #{coupling_apply.1} parent=1 // pred_check
      _
    $region31: #{coupling_apply.1} parent=1 // pred_check_branch
      %60 = sbr.rel (0) target = $region33
    $region32: #{coupling_apply.1} parent=1 // pred_region
      _
    $region33: #{coupling_apply.1} parent=1 // pred_fallthru
      _
    // Predicated region
    $region34: #{coupling_apply.1} parent=1 // pred_check
      _
    $region35: #{coupling_apply.1} parent=1 // pred_check_branch
      %62 = sbr.rel (0) target = $region37
    $region36: #{coupling_apply.1} parent=1 // pred_region
      %63 = dma.done [#allocation3], 1024
    $region37: #{coupling_apply.1} parent=1 // pred_fallthru
      _
    // Predicated region
    $region38: #{coupling_apply.1} parent=1 // pred_check
      _
    $region39: #{coupling_apply.1} parent=1 // pred_check_branch
      %65 = sbr.rel (0) target = $region41
    $region40: #{coupling_apply.1} parent=1 // pred_region
      %66 = dma.done [#allocation5], 2048
    $region41: #{coupling_apply.1} parent=1 // pred_fallthru
      _
    // Predicated region
    $region42: #{coupling_apply.1} parent=1 // pred_check
      _
    $region43: #{coupling_apply.1} parent=1 // pred_check_branch
      %68 = sbr.rel (0) target = $region45
    $region44: #{coupling_apply.1} parent=1 // pred_region
      %69 = dma.done [#allocation5], 1024
    $region45: #{coupling_apply.1} parent=1 // pred_fallthru
      _
    %v71 = vld [vmem:[%s0] sm:$0xff]
    %v72 = vpack.c.bf16 %v71, %v71
    %v73 = vld [vmem:[#allocation2] sm:$0xf]
    %v74 = vld [vmem:[#allocation2 + $0x4] sm:$0xf]
    %v75 = vld [vmem:[#allocation2 + $0x8] sm:$0xf]
    %v76 = vld [vmem:[#allocation2 + $0xc] sm:$0xf]
    %v77 = vld [vmem:[#allocation2 + $0x10] sm:$0xf]
    %v78 = vld [vmem:[#allocation2 + $0x14] sm:$0xf]
    %v79 = vld [vmem:[#allocation2 + $0x18] sm:$0xf]
    %v80 = vld [vmem:[#allocation2 + $0x1c] sm:$0xf]
    %v81 = vld [vmem:[#allocation2 + $0x20] sm:$0xf]
    %v82 = vld [vmem:[#allocation2 + $0x24] sm:$0xf]
    %v83 = vld [vmem:[#allocation2 + $0x28] sm:$0xf]
    %v84 = vld [vmem:[#allocation2 + $0x2c] sm:$0xf]
    %v85 = vld [vmem:[#allocation2 + $0x30] sm:$0xf]
    %v86 = vld [vmem:[#allocation2 + $0x34] sm:$0xf]
    %v87 = vld [vmem:[#allocation2 + $0x38] sm:$0xf]
    %v88 = vld [vmem:[#allocation2 + $0x3c] sm:$0xf]
    %v89 = vld [vmem:[%s3] sm:$0x1]
    %v91 = vlaneseq
    %v92 = vshrl.u32 %v91, 7
    %v93 = vsub.s32 0, %v92
    %v94 = vrot.slane %v89, %v93
    %v112 = vunpack.c.l.b16 %v73
    %v113 = vunpack.c.l.b16 %v74
    %v114 = vunpack.c.l.b16 %v75
    %v115 = vunpack.c.l.b16 %v76
    %v116 = vunpack.c.l.b16 %v77
    %v117 = vunpack.c.l.b16 %v78
    %v118 = vunpack.c.l.b16 %v79
    %v119 = vunpack.c.l.b16 %v80
    %v120 = vunpack.c.l.b16 %v81
    %v121 = vunpack.c.l.b16 %v82
    %v122 = vunpack.c.l.b16 %v83
    %v123 = vunpack.c.l.b16 %v84
    %v124 = vunpack.c.l.b16 %v85
    %v125 = vunpack.c.l.b16 %v86
    %v126 = vunpack.c.l.b16 %v87
    %v127 = vunpack.c.l.b16 %v88
    %v128 = vpack.c.b16 %v113, %v112
    %v129 = vpack.c.b16 %v115, %v114
    %v130 = vpack.c.b16 %v117, %v116
    %v131 = vpack.c.b16 %v119, %v118
    %v132 = vpack.c.b16 %v121, %v120
    %v133 = vpack.c.b16 %v123, %v122
    %v134 = vpack.c.b16 %v125, %v124
    %v135 = vpack.c.b16 %v127, %v126
    %144 = vmatprep.subr.bf16.mxu0 0
    %145 = vmatpush1.bf16.msra.mxu0 %v128
    %146 = vmatprep.subr.bf16.mxu0 0
    %147 = vmatpush1.bf16.msra.mxu0 %v129
    %148 = vmatprep.subr.bf16.mxu0 0
    %149 = vmatpush1.bf16.msra.mxu0 %v130
    %150 = vmatprep.subr.bf16.mxu0 0
    %151 = vmatpush1.bf16.msra.mxu0 %v131
    %152 = vmatprep.subr.bf16.mxu0 0
    %153 = vmatpush1.bf16.msra.mxu0 %v132
    %154 = vmatprep.subr.bf16.mxu0 0
    %155 = vmatpush1.bf16.msra.mxu0 %v133
    %156 = vmatprep.subr.bf16.mxu0 0
    %157 = vmatpush1.bf16.msra.mxu0 %v134
    %158 = vmatprep.subr.bf16.mxu0 0
    %159 = vmatpush1.bf16.msra.mxu0 %v135
    %160 = vmatprep.subr.bf16.mxu0 0
    %161 = vmatpush1.bf16.msra.mxu0 0
    %162 = vmatprep.subr.bf16.mxu0 0
    %163 = vmatpush1.bf16.msra.mxu0 0
    %164 = vmatprep.subr.bf16.mxu0 0
    %165 = vmatpush1.bf16.msra.mxu0 0
    %166 = vmatprep.subr.bf16.mxu0 0
    %167 = vmatpush1.bf16.msra.mxu0 0
    %168 = vmatprep.subr.bf16.mxu0 0
    %169 = vmatpush1.bf16.msra.mxu0 0
    %170 = vmatprep.subr.bf16.mxu0 0
    %171 = vmatpush1.bf16.msra.mxu0 0
    %172 = vmatprep.subr.bf16.mxu0 0
    %173 = vmatpush1.bf16.msra.mxu0 0
    %174 = vmatprep.subr.bf16.mxu0 0
    %175 = vmatpush1.bf16.msra.mxu0 0
    %176 = vmatprep.mubr.bf16.mxu0 0
    %177 = vmatmul.mubr.bf16.gmra.mrb[0].mxu0 %v72
    %v178 = vpop.f32.mrb[0].mxu0
    %v179 = vadd.f32 %v94, %v178
    %v180 = vpop.f32.mrb[0].mxu0
    %v181 = vpop.f32.mrb[0].mxu0
    %v182 = vpop.f32.mrb[0].mxu0
    %183 = vdwg.mxu0
    %v184 = vpack.c.bf16 %v179, %v179
    %v185 = vld [vmem:[#allocation4] sm:$0xf]
    %v186 = vld [vmem:[#allocation4 + $0x4] sm:$0xf]
    %v187 = vld [vmem:[#allocation4 + $0x8] sm:$0xf]
    %v188 = vld [vmem:[#allocation4 + $0xc] sm:$0xf]
    %v189 = vld [vmem:[#allocation4 + $0x10] sm:$0xf]
    %v190 = vld [vmem:[#allocation4 + $0x14] sm:$0xf]
    %v191 = vld [vmem:[#allocation4 + $0x18] sm:$0xf]
    %v192 = vld [vmem:[#allocation4 + $0x1c] sm:$0xf]
    %v193 = vld [vmem:[#allocation4 + $0x20] sm:$0xf]
    %v194 = vld [vmem:[#allocation4 + $0x24] sm:$0xf]
    %v195 = vld [vmem:[#allocation4 + $0x28] sm:$0xf]
    %v196 = vld [vmem:[#allocation4 + $0x2c] sm:$0xf]
    %v197 = vld [vmem:[#allocation4 + $0x30] sm:$0xf]
    %v198 = vld [vmem:[#allocation4 + $0x34] sm:$0xf]
    %v199 = vld [vmem:[#allocation4 + $0x38] sm:$0xf]
    %v200 = vld [vmem:[#allocation4 + $0x3c] sm:$0xf]
    %v201 = vld [vmem:[%s5] sm:$0x1]
    %v203 = vlaneseq
    %v204 = vshrl.u32 %v203, 7
    %v205 = vsub.s32 0, %v204
    %v206 = vrot.slane %v201, %v205
    %v224 = vunpack.c.l.b16 %v185
    %v225 = vunpack.c.l.b16 %v186
    %v226 = vunpack.c.l.b16 %v187
    %v227 = vunpack.c.l.b16 %v188
    %v228 = vunpack.c.l.b16 %v189
    %v229 = vunpack.c.l.b16 %v190
    %v230 = vunpack.c.l.b16 %v191
    %v231 = vunpack.c.l.b16 %v192
    %v232 = vunpack.c.l.b16 %v193
    %v233 = vunpack.c.l.b16 %v194
    %v234 = vunpack.c.l.b16 %v195
    %v235 = vunpack.c.l.b16 %v196
    %v236 = vunpack.c.l.b16 %v197
    %v237 = vunpack.c.l.b16 %v198
    %v238 = vunpack.c.l.b16 %v199
    %v239 = vunpack.c.l.b16 %v200
    %v240 = vpack.c.b16 %v225, %v224
    %v241 = vpack.c.b16 %v227, %v226
    %v242 = vpack.c.b16 %v229, %v228
    %v243 = vpack.c.b16 %v231, %v230
    %v244 = vpack.c.b16 %v233, %v232
    %v245 = vpack.c.b16 %v235, %v234
    %v246 = vpack.c.b16 %v237, %v236
    %v247 = vpack.c.b16 %v239, %v238
    %256 = vmatprep.subr.bf16.mxu0 0
    %257 = vmatpush1.bf16.msra.mxu0 %v240
    %258 = vmatprep.subr.bf16.mxu0 0
    %259 = vmatpush1.bf16.msra.mxu0 %v241
    %260 = vmatprep.subr.bf16.mxu0 0
    %261 = vmatpush1.bf16.msra.mxu0 %v242
    %262 = vmatprep.subr.bf16.mxu0 0
    %263 = vmatpush1.bf16.msra.mxu0 %v243
    %264 = vmatprep.subr.bf16.mxu0 0
    %265 = vmatpush1.bf16.msra.mxu0 %v244
    %266 = vmatprep.subr.bf16.mxu0 0
    %267 = vmatpush1.bf16.msra.mxu0 %v245
    %268 = vmatprep.subr.bf16.mxu0 0
    %269 = vmatpush1.bf16.msra.mxu0 %v246
    %270 = vmatprep.subr.bf16.mxu0 0
    %271 = vmatpush1.bf16.msra.mxu0 %v247
    %272 = vmatprep.subr.bf16.mxu0 0
    %273 = vmatpush1.bf16.msra.mxu0 0
    %274 = vmatprep.subr.bf16.mxu0 0
    %275 = vmatpush1.bf16.msra.mxu0 0
    %276 = vmatprep.subr.bf16.mxu0 0
    %277 = vmatpush1.bf16.msra.mxu0 0
    %278 = vmatprep.subr.bf16.mxu0 0
    %279 = vmatpush1.bf16.msra.mxu0 0
    %280 = vmatprep.subr.bf16.mxu0 0
    %281 = vmatpush1.bf16.msra.mxu0 0
    %282 = vmatprep.subr.bf16.mxu0 0
    %283 = vmatpush1.bf16.msra.mxu0 0
    %284 = vmatprep.subr.bf16.mxu0 0
    %285 = vmatpush1.bf16.msra.mxu0 0
    %286 = vmatprep.subr.bf16.mxu0 0
    %287 = vmatpush1.bf16.msra.mxu0 0
    %288 = vmatprep.mubr.bf16.mxu0 0
    %289 = vmatmul.mubr.bf16.gmra.mrb[0].mxu0 %v184
    %v290 = vpop.f32.mrb[0].mxu0
    %v291 = vadd.f32 %v206, %v290
    %v292 = vpop.f32.mrb[0].mxu0
    %v293 = vpop.f32.mrb[0].mxu0
    %v294 = vpop.f32.mrb[0].mxu0
    %295 = vdwg.mxu0
    %v296 = vmax.f32 %v291, 0.0
    %v297 = vpack.c.bf16 %v296, %v296
    %s298 = scalar_lea.vmem [#allocation4], 64
    %v299 = vld [vmem:[%s298] sm:$0xf]
    %v300 = vld [vmem:[%s298 + $0x4] sm:$0xf]
    %v301 = vld [vmem:[%s298 + $0x8] sm:$0xf]
    %v302 = vld [vmem:[%s298 + $0xc] sm:$0xf]
    %v303 = vld [vmem:[%s298 + $0x10] sm:$0xf]
    %v304 = vld [vmem:[%s298 + $0x14] sm:$0xf]
    %v305 = vld [vmem:[%s298 + $0x18] sm:$0xf]
    %v306 = vld [vmem:[%s298 + $0x1c] sm:$0xf]
    %v307 = vld [vmem:[%s298 + $0x20] sm:$0xf]
    %v308 = vld [vmem:[%s298 + $0x24] sm:$0xf]
    %v309 = vld [vmem:[%s298 + $0x28] sm:$0xf]
    %v310 = vld [vmem:[%s298 + $0x2c] sm:$0xf]
    %v311 = vld [vmem:[%s298 + $0x30] sm:$0xf]
    %v312 = vld [vmem:[%s298 + $0x34] sm:$0xf]
    %v313 = vld [vmem:[%s298 + $0x38] sm:$0xf]
    %v314 = vld [vmem:[%s298 + $0x3c] sm:$0xf]
    %s315 = scalar_lea.vmem %s5, 1
    %v316 = vld [vmem:[%s315] sm:$0x1]
    %v318 = vlaneseq
    %v319 = vshrl.u32 %v318, 7
    %v320 = vsub.s32 0, %v319
    %v321 = vrot.slane %v316, %v320
    %v339 = vunpack.c.l.b16 %v299
    %v340 = vunpack.c.l.b16 %v300
    %v341 = vunpack.c.l.b16 %v301
    %v342 = vunpack.c.l.b16 %v302
    %v343 = vunpack.c.l.b16 %v303
    %v344 = vunpack.c.l.b16 %v304
    %v345 = vunpack.c.l.b16 %v305
    %v346 = vunpack.c.l.b16 %v306
    %v347 = vunpack.c.l.b16 %v307
    %v348 = vunpack.c.l.b16 %v308
    %v349 = vunpack.c.l.b16 %v309
    %v350 = vunpack.c.l.b16 %v310
    %v351 = vunpack.c.l.b16 %v311
    %v352 = vunpack.c.l.b16 %v312
    %v353 = vunpack.c.l.b16 %v313
    %v354 = vunpack.c.l.b16 %v314
    %v355 = vpack.c.b16 %v340, %v339
    %v356 = vpack.c.b16 %v342, %v341
    %v357 = vpack.c.b16 %v344, %v343
    %v358 = vpack.c.b16 %v346, %v345
    %v359 = vpack.c.b16 %v348, %v347
    %v360 = vpack.c.b16 %v350, %v349
    %v361 = vpack.c.b16 %v352, %v351
    %v362 = vpack.c.b16 %v354, %v353
    %371 = vmatprep.subr.bf16.mxu0 0
    %372 = vmatpush1.bf16.msra.mxu0 %v355
    %373 = vmatprep.subr.bf16.mxu0 0
    %374 = vmatpush1.bf16.msra.mxu0 %v356
    %375 = vmatprep.subr.bf16.mxu0 0
    %376 = vmatpush1.bf16.msra.mxu0 %v357
    %377 = vmatprep.subr.bf16.mxu0 0
    %378 = vmatpush1.bf16.msra.mxu0 %v358
    %379 = vmatprep.subr.bf16.mxu0 0
    %380 = vmatpush1.bf16.msra.mxu0 %v359
    %381 = vmatprep.subr.bf16.mxu0 0
    %382 = vmatpush1.bf16.msra.mxu0 %v360
    %383 = vmatprep.subr.bf16.mxu0 0
    %384 = vmatpush1.bf16.msra.mxu0 %v361
    %385 = vmatprep.subr.bf16.mxu0 0
    %386 = vmatpush1.bf16.msra.mxu0 %v362
    %387 = vmatprep.subr.bf16.mxu0 0
    %388 = vmatpush1.bf16.msra.mxu0 0
    %389 = vmatprep.subr.bf16.mxu0 0
    %390 = vmatpush1.bf16.msra.mxu0 0
    %391 = vmatprep.subr.bf16.mxu0 0
    %392 = vmatpush1.bf16.msra.mxu0 0
    %393 = vmatprep.subr.bf16.mxu0 0
    %394 = vmatpush1.bf16.msra.mxu0 0
    %395 = vmatprep.subr.bf16.mxu0 0
    %396 = vmatpush1.bf16.msra.mxu0 0
    %397 = vmatprep.subr.bf16.mxu0 0
    %398 = vmatpush1.bf16.msra.mxu0 0
    %399 = vmatprep.subr.bf16.mxu0 0
    %400 = vmatpush1.bf16.msra.mxu0 0
    %401 = vmatprep.subr.bf16.mxu0 0
    %402 = vmatpush1.bf16.msra.mxu0 0
    %403 = vmatprep.mubr.bf16.mxu0 0
    %404 = vmatmul.mubr.bf16.gmra.mrb[0].mxu0 %v297
    %v405 = vpop.f32.mrb[0].mxu0
    %v406 = vadd.f32 %v321, %v405
    %v407 = vpop.f32.mrb[0].mxu0
    %v408 = vpop.f32.mrb[0].mxu0
    %v409 = vpop.f32.mrb[0].mxu0
    %410 = vdwg.mxu0
    %v411 = vmax.f32 %v406, 0.0
    %v412 = vpack.c.bf16 %v411, %v411
    %v413 = vld [vmem:[#allocation6] sm:$0xf]
    %v414 = vld [vmem:[#allocation6 + $0x4] sm:$0xf]
    %v415 = vld [vmem:[#allocation6 + $0x8] sm:$0xf]
    %v416 = vld [vmem:[#allocation6 + $0xc] sm:$0xf]
    %v417 = vld [vmem:[#allocation6 + $0x10] sm:$0xf]
    %v418 = vld [vmem:[#allocation6 + $0x14] sm:$0xf]
    %v419 = vld [vmem:[#allocation6 + $0x18] sm:$0xf]
    %v420 = vld [vmem:[#allocation6 + $0x1c] sm:$0xf]
    %v421 = vld [vmem:[#allocation6 + $0x20] sm:$0xf]
    %v422 = vld [vmem:[#allocation6 + $0x24] sm:$0xf]
    %v423 = vld [vmem:[#allocation6 + $0x28] sm:$0xf]
    %v424 = vld [vmem:[#allocation6 + $0x2c] sm:$0xf]
    %v425 = vld [vmem:[#allocation6 + $0x30] sm:$0xf]
    %v426 = vld [vmem:[#allocation6 + $0x34] sm:$0xf]
    %v427 = vld [vmem:[#allocation6 + $0x38] sm:$0xf]
    %v428 = vld [vmem:[#allocation6 + $0x3c] sm:$0xf]
    %v429 = vld [vmem:[%s7] sm:$0x1]
    %v431 = vlaneseq
    %v432 = vshrl.u32 %v431, 7
    %v433 = vsub.s32 0, %v432
    %v434 = vrot.slane %v429, %v433
    %v452 = vunpack.c.l.b16 %v413
    %v453 = vunpack.c.l.b16 %v414
    %v454 = vunpack.c.l.b16 %v415
    %v455 = vunpack.c.l.b16 %v416
    %v456 = vunpack.c.l.b16 %v417
    %v457 = vunpack.c.l.b16 %v418
    %v458 = vunpack.c.l.b16 %v419
    %v459 = vunpack.c.l.b16 %v420
    %v460 = vunpack.c.l.b16 %v421
    %v461 = vunpack.c.l.b16 %v422
    %v462 = vunpack.c.l.b16 %v423
    %v463 = vunpack.c.l.b16 %v424
    %v464 = vunpack.c.l.b16 %v425
    %v465 = vunpack.c.l.b16 %v426
    %v466 = vunpack.c.l.b16 %v427
    %v467 = vunpack.c.l.b16 %v428
    %v468 = vpack.c.b16 %v453, %v452
    %v469 = vpack.c.b16 %v455, %v454
    %v470 = vpack.c.b16 %v457, %v456
    %v471 = vpack.c.b16 %v459, %v458
    %v472 = vpack.c.b16 %v461, %v460
    %v473 = vpack.c.b16 %v463, %v462
    %v474 = vpack.c.b16 %v465, %v464
    %v475 = vpack.c.b16 %v467, %v466
    %484 = vmatprep.subr.bf16.mxu0 0
    %485 = vmatpush1.bf16.msra.mxu0 %v468
    %486 = vmatprep.subr.bf16.mxu0 0
    %487 = vmatpush1.bf16.msra.mxu0 %v469
    %488 = vmatprep.subr.bf16.mxu0 0
    %489 = vmatpush1.bf16.msra.mxu0 %v470
    %490 = vmatprep.subr.bf16.mxu0 0
    %491 = vmatpush1.bf16.msra.mxu0 %v471
    %492 = vmatprep.subr.bf16.mxu0 0
    %493 = vmatpush1.bf16.msra.mxu0 %v472
    %494 = vmatprep.subr.bf16.mxu0 0
    %495 = vmatpush1.bf16.msra.mxu0 %v473
    %496 = vmatprep.subr.bf16.mxu0 0
    %497 = vmatpush1.bf16.msra.mxu0 %v474
    %498 = vmatprep.subr.bf16.mxu0 0
    %499 = vmatpush1.bf16.msra.mxu0 %v475
    %500 = vmatprep.subr.bf16.mxu0 0
    %501 = vmatpush1.bf16.msra.mxu0 0
    %502 = vmatprep.subr.bf16.mxu0 0
    %503 = vmatpush1.bf16.msra.mxu0 0
    %504 = vmatprep.subr.bf16.mxu0 0
    %505 = vmatpush1.bf16.msra.mxu0 0
    %506 = vmatprep.subr.bf16.mxu0 0
    %507 = vmatpush1.bf16.msra.mxu0 0
    %508 = vmatprep.subr.bf16.mxu0 0
    %509 = vmatpush1.bf16.msra.mxu0 0
    %510 = vmatprep.subr.bf16.mxu0 0
    %511 = vmatpush1.bf16.msra.mxu0 0
    %512 = vmatprep.subr.bf16.mxu0 0
    %513 = vmatpush1.bf16.msra.mxu0 0
    %514 = vmatprep.subr.bf16.mxu0 0
    %515 = vmatpush1.bf16.msra.mxu0 0
    %516 = vmatprep.mubr.bf16.mxu0 0
    %517 = vmatmul.mubr.bf16.gmra.mrb[0].mxu0 %v412
    %v518 = vpop.f32.mrb[0].mxu0
    %v519 = vadd.f32 %v434, %v518
    %v520 = vpop.f32.mrb[0].mxu0
    %v521 = vpop.f32.mrb[0].mxu0
    %v522 = vpop.f32.mrb[0].mxu0
    %523 = vdwg.mxu0
    %v524 = vld [vmem:[%s1] sm:$0xff]
    %v525 = vadd.f32 %v524, %v519
    %526 = vst [vmem:[%s8] sm:$0xff] %v525
    // Predicated region
    $region46: #{coupling_apply.1} parent=1 // pred_check
      _
    $region47: #{coupling_apply.1} parent=1 // pred_check_branch
      %528 = sbr.rel (0) target = $region49
    $region48: #{coupling_apply.1} parent=1 // pred_region
      _
    $region49: #{coupling_apply.1} parent=1 // pred_fallthru
      _
    // Predicated region
    $region50: #{coupling_apply.1} parent=1 // pred_check
      _
    $region51: #{coupling_apply.1} parent=1 // pred_check_branch
      %530 = sbr.rel (0) target = $region53
    $region52: #{coupling_apply.1} parent=1 // pred_region
      _
    $region53: #{coupling_apply.1} parent=1 // pred_fallthru
      _
    %531 = vsyncpa [#allocation3], 1
    %532 = vsyncpa [#allocation5], 1

</llo_original>
